<compile_context>
chip_gen: v5e
topology: v5e:2x2
jax: 0.10.0
libtpu: 0.0.40
codegen_flags: <defaults>
</compile_context>

<pallas_src>
import numpy as np
import jax
import jax.numpy as jnp
from jax.experimental import pallas as pl
from jax.experimental.pallas import tpu as pltpu

LANE = 128

# ---------------------------------------------------------------------------
# per-chip tuning (resolved once)
# ---------------------------------------------------------------------------
_TUNE = None


def _tpu_tuning():
    """target_bytes: per-stream block budget; split: force >=2 grid steps
    (only useful on multi-TensorCore chips); vmem_limit: scoped VMEM bytes."""
    global _TUNE
    if _TUNE is None:
        kind = ""
        try:
            kind = jax.devices()[0].device_kind.lower()
        except Exception:
            pass
        single_tc = any(t in kind for t in
                        ("v5 lite", "v5e", "v5litepod", "v6 lite", "v6e", "trillium"))
        if single_tc:
            # single TensorCore, 128 MiB physical VMEM: one big tile, no split
            _TUNE = dict(target_bytes=4 << 20, vmem_limit=64 * 1024 * 1024, split=False)
        else:
            # v7x (2 TCs, 64 MiB VMEM) and unknown chips: 2 MiB blocks + split
            _TUNE = dict(target_bytes=2 << 20, vmem_limit=32 * 1024 * 1024, split=True)
    return _TUNE


# ---------------------------------------------------------------------------
# layout helpers: flatten to a single lane-dense (rows, lane) slab
# ---------------------------------------------------------------------------
def _pick_lane(total, max_lane=2048):
    """Largest multiple of 128 that divides `total`, capped at max_lane."""
    for k in range(max_lane // LANE, 0, -1):
        lw = LANE * k
        if total % lw == 0:
            return lw
    return None


def _pick_row_tile(rows, lane, itemsize, target_bytes, split):
    """Row tile: <= target_bytes per block, multiple of 8 (or full), divides
    rows; optionally split into >=2 grid steps for multi-TC megacore."""
    max_tr = max(1, target_bytes // (lane * itemsize))
    if split and rows >= 16:
        max_tr = min(max_tr, rows // 2)
    if rows <= max_tr:
        return rows
    tr = (max_tr // 8) * 8
    while tr >= 8:
        if rows % tr == 0:
            return tr
        tr -= 8
    return rows


# ---------------------------------------------------------------------------
# Kernel A: fused standard CFG combine (+ optional inpainting blend)
#   den = uncond + (cond - uncond) * cond_scale
#   out = init * mask + (1 - mask) * den            (fused variant)
# cond/uncond halves come from the SAME (2, rows, lane) view of x_out through
# two BlockSpecs with different index_maps (no wrapper slices).
# ---------------------------------------------------------------------------
def _cfg_fused_mask_kernel(cs_ref, xc_ref, xu_ref, init_ref, mask_ref, out_ref):
    cs = cs_ref[0]
    xu = xu_ref[...].astype(jnp.float32)
    den = xu + (xc_ref[...].astype(jnp.float32) - xu) * cs
    m = mask_ref[...].astype(jnp.float32)
    out_ref[...] = (init_ref[...].astype(jnp.float32) * m
                    + (1.0 - m) * den).astype(out_ref.dtype)


def _cfg_only_kernel(cs_ref, xc_ref, xu_ref, out_ref):
    cs = cs_ref[0]
    xu = xu_ref[...].astype(jnp.float32)
    out_ref[...] = (xu + (xc_ref[...].astype(jnp.float32) - xu) * cs
                    ).astype(out_ref.dtype)


def cfg_combine_fast(x_out, n_uncond, weight, init_slab=None, mask_slab=None):
    """Standard CFG path (one cond per image, identity mapping, uniform
    weight), optionally fused with the inpainting mask blend.
    init_slab/mask_slab, when given, are cached (rows, lane) slabs."""
    per_shape = tuple(x_out.shape[1:])
    out_shape = (n_uncond,) + per_shape
    total = int(np.prod(out_shape))
    itemsize = np.dtype(x_out.dtype).itemsize
    assert x_out.shape[0] == 2 * n_uncond

    lane = _pick_lane(total)
    if lane is None:
        # TODO(synk): latent sizes not divisible by 128 fall back to plain JAX.
        xc = x_out[:n_uncond].astype(jnp.float32)
        xu = x_out[n_uncond:].astype(jnp.float32)
        den = xu + (xc - xu) * weight
        if mask_slab is not None:
            m = jnp.broadcast_to(mask_slab, out_shape).astype(jnp.float32)
            den = (jnp.broadcast_to(init_slab, out_shape).astype(jnp.float32) * m
                   + (1.0 - m) * den)
        return den.astype(x_out.dtype)

    rows = total // lane
    tune = _tpu_tuning()
    tr = _pick_row_tile(rows, lane, itemsize, tune["target_bytes"], tune["split"])

    x_slab = x_out.reshape(2, rows, lane)   # layout-preserving view of full x_out
    cs_arr = jnp.asarray([weight], jnp.float32)

    smem = pl.BlockSpec(memory_space=pltpu.MemorySpace.SMEM)
    cond_half = pl.BlockSpec((None, tr, lane), lambda i: (0, i, 0))
    uncond_half = pl.BlockSpec((None, tr, lane), lambda i: (1, i, 0))
    slab2d = pl.BlockSpec((tr, lane), lambda i: (i, 0))

    if mask_slab is not None:
        kernel = _cfg_fused_mask_kernel
        inputs = (cs_arr, x_slab, x_slab, init_slab, mask_slab)
        in_specs = [smem, cond_half, uncond_half, slab2d, slab2d]
        flops, streams = 7 * total, 5        # 4 input streams + 1 output stream
    else:
        kernel = _cfg_only_kernel
        inputs = (cs_arr, x_slab, x_slab)
        in_specs = [smem, cond_half, uncond_half]
        flops, streams = 3 * total, 3        # 2 input streams + 1 output stream

    out = pl.pallas_call(
        kernel,
        grid=(rows // tr,),
        in_specs=in_specs,
        out_specs=pl.BlockSpec((tr, lane), lambda i: (i, 0)),
        out_shape=jax.ShapeDtypeStruct((rows, lane), x_out.dtype),
        compiler_params=pltpu.CompilerParams(
            dimension_semantics=("parallel",),
            vmem_limit_bytes=tune["vmem_limit"]),
        cost_estimate=pl.CostEstimate(
            flops=flops, transcendentals=0,
            bytes_accessed=streams * total * itemsize),
    )(*inputs)
    return out.reshape(out_shape)


# ---------------------------------------------------------------------------
# Kernel B: general combine_denoised (arbitrary conds_list / multi-cond)
#   denoised[d] = uncond[d] + sum (x_out[f]-uncond[d])*w
#               = sum w*x_out[f] + (1 - sum w) * uncond[d]
# Grid = (batch, row_tiles, K); K innermost so the per-image output block
# stays resident.  The cond row index is data-dependent and fed through
# scalar prefetch; padded slots carry weight 0 (pl.when guarded) and repeat
# the last real index so the pipeline dedups the DMA.
# ---------------------------------------------------------------------------
def _cfg_general_kernel_f32(idx_ref, w_ref, ws_ref, xc_ref, xu_ref, out_ref):
    b = pl.program_id(0)
    k = pl.program_id(2)

    @pl.when(k == 0)
    def _():
        out_ref[...] = jnp.zeros_like(out_ref)

    w = w_ref[b, k]

    @pl.when(w != 0.0)
    def _():
        out_ref[...] += xc_ref[...].astype(jnp.float32) * w

    @pl.when(k == pl.num_programs(2) - 1)
    def _():
        out_ref[...] += (1.0 - ws_ref[b]) * xu_ref[...].astype(jnp.float32)


def _cfg_general_kernel_acc(idx_ref, w_ref, ws_ref, xc_ref, xu_ref, out_ref,
                            acc_ref):
    b = pl.program_id(0)
    k = pl.program_id(2)

    @pl.when(k == 0)
    def _():
        acc_ref[...] = jnp.zeros_like(acc_ref)

    w = w_ref[b, k]

    @pl.when(w != 0.0)
    def _():
        acc_ref[...] += xc_ref[...].astype(jnp.float32) * w

    @pl.when(k == pl.num_programs(2) - 1)
    def _():
        out_ref[...] = (acc_ref[...]
                        + (1.0 - ws_ref[b]) * xu_ref[...].astype(jnp.float32)
                        ).astype(out_ref.dtype)


def cfg_combine_general(x_out, conds_list, n_uncond, cond_scale):
    B = n_uncond
    n_cond = x_out.shape[0] - B
    per_shape = tuple(x_out.shape[1:])
    D = int(np.prod(per_shape))
    itemsize = np.dtype(x_out.dtype).itemsize
    K = max(max((len(e) for e in conds_list), default=1), 1)
    n_entries = sum(len(e) for e in conds_list)

    lane = _pick_lane(D)
    if lane is None:
        # TODO(synk): odd latent sizes fall back to plain JAX accumulation.
        x_cond = x_out[:n_cond].astype(jnp.float32)
        x_uncond = x_out[n_cond:].astype(jnp.float32)
        rows_out = []
        for d, entries in enumerate(conds_list):
            row = x_uncond[d]
            for f, w in entries:
                row = row + (x_cond[f] - x_uncond[d]) * (w * cond_scale)
            rows_out.append(row)
        return jnp.stack(rows_out).astype(x_out.dtype)

    rb = D // lane
    tune = _tpu_tuning()
    tr = _pick_row_tile(rb, lane, itemsize, tune["target_bytes"], False)
    rbt = rb // tr

    idx = np.zeros((B, K), np.int32)
    wts = np.zeros((B, K), np.float32)
    for d, entries in enumerate(conds_list):
        for k, (f, weight) in enumerate(entries):
            idx[d, k] = f
            wts[d, k] = weight * cond_scale
        last = entries[-1][0] if entries else 0  # empty entry -> pure uncond out
        for k in range(len(entries), K):
            idx[d, k] = last   # repeat last real index -> pipeline dedups DMA
            wts[d, k] = 0.0    # guarded by pl.when(w != 0)
    wsum = wts.sum(axis=1).astype(np.float32)

    x_slab = x_out.reshape(x_out.shape[0], rb, lane)   # no slicing, no HBM copy

    use_scratch = x_out.dtype != jnp.float32
    kernel = _cfg_general_kernel_acc if use_scratch else _cfg_general_kernel_f32
    scratch = [pltpu.VMEM((tr, lane), jnp.float32)] if use_scratch else []

    grid_spec = pltpu.PrefetchScalarGridSpec(
        num_scalar_prefetch=3,
        grid=(B, rbt, K),
        in_specs=[
            # gathered cond row (data-dependent index via scalar prefetch)
            pl.BlockSpec((None, tr, lane),
                         lambda b, r, k, idx, w, ws: (idx[b, k], r, 0)),
            # uncond row for image b lives at row n_cond + b of the same slab
            pl.BlockSpec((None, tr, lane),
                         lambda b, r, k, idx, w, ws: (n_cond + b, r, 0)),
        ],
        out_specs=pl.BlockSpec((None, tr, lane),
                               lambda b, r, k, idx, w, ws: (b, r, 0)),
        scratch_shapes=scratch,
    )

    bytes_est = (n_entries * D + 2 * B * D) * itemsize
    out = pl.pallas_call(
        kernel,
        grid_spec=grid_spec,
        out_shape=jax.ShapeDtypeStruct((B, rb, lane), x_out.dtype),
        compiler_params=pltpu.CompilerParams(
            dimension_semantics=("parallel", "parallel", "arbitrary"),
            vmem_limit_bytes=tune["vmem_limit"]),
        cost_estimate=pl.CostEstimate(flops=(2 * n_entries + 2 * B) * D,
                                      transcendentals=0,
                                      bytes_accessed=bytes_est),
    )(jnp.asarray(idx), jnp.asarray(wts), jnp.asarray(wsum), x_slab, x_slab)
    return out.reshape((B,) + per_shape)


# ---------------------------------------------------------------------------
# Kernel C: standalone inpainting blend  out = init*mask + (1-mask)*x
# (used on the mask_before_denoising path; nmask computed in-kernel)
# ---------------------------------------------------------------------------
def _mask_blend_kernel(init_ref, mask_ref, x_ref, out_ref):
    m = mask_ref[...].astype(jnp.float32)
    out_ref[...] = (init_ref[...].astype(jnp.float32) * m
                    + (1.0 - m) * x_ref[...].astype(jnp.float32)
                    ).astype(out_ref.dtype)


def mask_blend(init_slab, mask_slab, x):
    """init_slab/mask_slab are cached (rows, lane) slabs (or full-shape arrays
    on the non-128-divisible fallback)."""
    shape = x.shape
    total = int(np.prod(shape))
    itemsize = np.dtype(x.dtype).itemsize

    lane = _pick_lane(total)
    if lane is None:
        m = jnp.broadcast_to(mask_slab, shape).astype(jnp.float32)
        return (jnp.broadcast_to(init_slab, shape).astype(jnp.float32) * m
                + (1.0 - m) * x.astype(jnp.float32)).astype(x.dtype)

    rows = total // lane
    tune = _tpu_tuning()
    tr = _pick_row_tile(rows, lane, itemsize, tune["target_bytes"], tune["split"])

    slab = pl.BlockSpec((tr, lane), lambda i: (i, 0))
    out = pl.pallas_call(
        _mask_blend_kernel,
        grid=(rows // tr,),
        in_specs=[slab, slab, slab],
        out_specs=slab,
        out_shape=jax.ShapeDtypeStruct((rows, lane), x.dtype),
        compiler_params=pltpu.CompilerParams(
            dimension_semantics=("parallel",),
            vmem_limit_bytes=tune["vmem_limit"]),
        cost_estimate=pl.CostEstimate(flops=4 * total, transcendentals=0,
                                      bytes_accessed=4 * total * itemsize),
    )(init_slab, mask_slab, x.reshape(rows, lane))
    return out.reshape(shape)


# ---------------------------------------------------------------------------
# CFGDenoiser (standard, non-edit-model path)
# ---------------------------------------------------------------------------
class CFGDenoiser:
    def __init__(self, sampler=None):
        self.model_wrap = None
        self.mask = None
        # TODO(synk): self.nmask kept for API parity but the kernels compute
        # nmask = 1 - mask in-kernel (webui always sets nmask as the complement).
        self.nmask = None
        self.init_latent = None
        self.steps = None
        self.total_steps = None
        self.step = 0
        self.image_cfg_scale = None
        self.padded_cond_uncond = False
        self.sampler = sampler
        self.p = None
        self.mask_before_denoising = False
        self._blend_cache = {}

    def inner_model(self, x_in, sigma_in, cond):
        # TODO(synk): the real inner model is an external UNet (property raises
        # NotImplementedError in PyTorch); deterministic elementwise stand-in.
        s = sigma_in.reshape((-1,) + (1,) * (x_in.ndim - 1))
        return x_in / (1.0 + s * s)

    def get_pred_x0(self, x_in, x_out, sigma):
        return x_out

    def combine_denoised_for_edit_model(self, x_out, cond_scale):
        out_cond, out_img_cond, out_uncond = jnp.split(x_out, 3)
        return (out_uncond + cond_scale * (out_cond - out_img_cond)
                + self.image_cfg_scale * (out_img_cond - out_uncond))

    def combine_denoised(self, x_out, conds_list, uncond, cond_scale):
        n_uncond = uncond.shape[0]
        standard = (len(conds_list) == n_uncond
                    and x_out.shape[0] == 2 * n_uncond
                    and all(len(e) == 1 for e in conds_list)
                    and all(e[0][0] == d for d, e in enumerate(conds_list))
                    and all(e[0][1] == conds_list[0][0][1] for e in conds_list))
        if standard:
            return cfg_combine_fast(x_out, n_uncond,
                                    conds_list[0][0][1] * cond_scale)
        return cfg_combine_general(x_out, conds_list, n_uncond, cond_scale)

    def _blend_slabs(self, shape, dtype):
        """Cache the lane-dense slab form of init_latent / mask once per
        sampling run (they are constant across denoiser steps)."""
        key = (tuple(int(s) for s in shape), np.dtype(dtype).name)
        cached = self._blend_cache.get(key)
        if cached is None:
            total = int(np.prod(shape))
            lane = _pick_lane(total)
            init_full = jnp.broadcast_to(jnp.asarray(self.init_latent), shape)
            mask_full = jnp.broadcast_to(jnp.asarray(self.mask), shape)
            if lane is not None:
                rows = total // lane
                init_full = init_full.reshape(rows, lane)
                mask_full = mask_full.reshape(rows, lane)
            cached = (init_full, mask_full)
            self._blend_cache[key] = cached
        return cached

    def forward(self, x, sigma, uncond, cond, cond_scale, s_min_uncond, image_cond):
        batch = x.shape[0]
        # TODO(synk): prompt_parser.reconstruct_multicond_batch, refiner, webui
        # callbacks, pad_cond, skip-uncond and edit-model paths depend on
        # external webui state (shared/state/prompt_parser) and are not
        # modelled; the standard path uses one cond per image with weight 1.0.
        conds_list = [[(i, 1.0)] for i in range(batch)]

        if self.mask_before_denoising and self.mask is not None:
            init_s, mask_s = self._blend_slabs(x.shape, x.dtype)
            x = mask_blend(init_s, mask_s, x)

        # batch assembly: single concatenate (repeats == 1 on the standard path)
        x_in = jnp.concatenate([x, x])
        sigma_in = jnp.concatenate([sigma, sigma])
        image_cond_in = jnp.concatenate([image_cond, image_cond])
        cond_in = jnp.concatenate([cond, uncond])
        cond_dict = {"c_crossattn": [cond_in], "c_concat": [image_cond_in]}

        x_out = self.inner_model(x_in, sigma_in, cond_dict)

        standard = all(len(e) == 1 and e[0] == (d, 1.0)
                       for d, e in enumerate(conds_list))
        if self.mask is not None and not self.mask_before_denoising and standard:
            # fused CFG combine + inpainting blend: one kernel, no extra HBM
            # round trip of `denoised`.
            init_s, mask_s = self._blend_slabs(x.shape, x.dtype)
            denoised = cfg_combine_fast(x_out, batch, 1.0 * cond_scale,
                                        init_slab=init_s, mask_slab=mask_s)
        else:
            denoised = self.combine_denoised(x_out, conds_list, uncond, cond_scale)
            if self.mask is not None and not self.mask_before_denoising:
                init_s, mask_s = self._blend_slabs(denoised.shape, denoised.dtype)
                denoised = mask_blend(init_s, mask_s, denoised)

        self.step += 1
        return denoised


if __name__ == "__main__":
    key = jax.random.PRNGKey(0)
    kx, ks, ku, kc, ki, km, kl, ko = jax.random.split(key, 8)

    B, C, H, W = 2, 4, 16, 16          # C*H*W = 1024
    seq, hidden = 8, 32

    x = jax.random.normal(kx, (B, C, H, W), jnp.float32)
    sigma = jnp.abs(jax.random.normal(ks, (B,), jnp.float32)) + 0.5
    uncond = jax.random.normal(ku, (B, seq, hidden), jnp.float32)
    cond = jax.random.normal(kc, (B, seq, hidden), jnp.float32)
    image_cond = jax.random.normal(ki, (B, C, H, W), jnp.float32)

    denoiser = CFGDenoiser()
    denoiser.init_latent = jax.random.normal(kl, (B, C, H, W), jnp.float32)
    mask = jax.nn.sigmoid(jax.random.normal(km, (B, C, H, W), jnp.float32))
    denoiser.mask = mask
    denoiser.nmask = 1.0 - mask        # webui always sets nmask = 1 - mask

    cond_scale = 7.0

    # ---- test 1: fused combine + mask blend (standard inpainting path) ----
    out = denoiser.forward(x, sigma, uncond, cond, cond_scale, 0.0, image_cond)
    out = jax.block_until_ready(out)

    s_in = jnp.concatenate([sigma, sigma]).reshape(-1, 1, 1, 1)
    x_in_ref = jnp.concatenate([x, x])
    x_out_ref = x_in_ref / (1.0 + s_in * s_in)
    xc_ref, xu_ref = x_out_ref[:B], x_out_ref[B:]
    den_ref = xu_ref + (xc_ref - xu_ref) * cond_scale
    ref = denoiser.init_latent * mask + (1.0 - mask) * den_ref

    assert out.shape == (B, C, H, W) and out.dtype == jnp.float32
    assert jnp.allclose(out, ref, atol=1e-5, rtol=1e-5), "fused path mismatch"

    # ---- test 2: mask_before_denoising path (mask_blend + plain combine) ----
    denoiser.mask_before_denoising = True
    out2 = jax.block_until_ready(
        denoiser.forward(x, sigma, uncond, cond, cond_scale, 0.0, image_cond))
    x_blend = denoiser.init_latent * mask + (1.0 - mask) * x
    x_in2 = jnp.concatenate([x_blend, x_blend])
    x_out2 = x_in2 / (1.0 + s_in * s_in)
    ref2 = x_out2[B:] + (x_out2[:B] - x_out2[B:]) * cond_scale
    assert jnp.allclose(out2, ref2, atol=1e-5, rtol=1e-5), "mask-before path mismatch"
    denoiser.mask_before_denoising = False

    # ---- test 3: general multi-cond (ragged) combine_denoised ----
    n_cond_rows = 3
    x_out_g = jax.random.normal(ko, (n_cond_rows + B, C, H, W), jnp.float32)
    conds_list_g = [[(0, 0.8), (2, 0.4)], [(1, 1.0)]]
    got = jax.block_until_ready(
        denoiser.combine_denoised(x_out_g, conds_list_g, uncond, 5.0))
    xcg, xug = x_out_g[:-B], x_out_g[-B:]
    refg = jnp.stack([
        xug[0] + (xcg[0] - xug[0]) * (0.8 * 5.0) + (xcg[2] - xug[0]) * (0.4 * 5.0),
        xug[1] + (xcg[1] - xug[1]) * (1.0 * 5.0),
    ])
    assert jnp.allclose(got, refg, atol=1e-5, rtol=1e-5), "general combine mismatch"

    print("KERNEL_OK")
</pallas_src>

<mosaic_0001>
module attributes {stable_mosaic.version = 11 : i64} {
  func.func @_cfg_fused_mask_kernel(%arg0: i32, %arg1: memref<1xf32, #tpu.memory_space<smem>>, %arg2: memref<1x1x2048xf32, #tpu.memory_space<vmem>>, %arg3: memref<1x1x2048xf32, #tpu.memory_space<vmem>>, %arg4: memref<1x2048xf32, #tpu.memory_space<vmem>>, %arg5: memref<1x2048xf32, #tpu.memory_space<vmem>>, %arg6: memref<1x2048xf32, #tpu.memory_space<vmem>>) attributes {dimension_semantics = [#tpu.dimension_semantics<parallel>], iteration_bounds = array<i64: 1>, scalar_prefetch = 0 : i64, scratch_operands = 0 : i64, tpu.core_type = #tpu.core_type<tc>, window_params = [{transform_indices = @transform_0, window_bounds = array<i64: 1>}, {transform_indices = @transform_1, window_bounds = array<i64: 1, 1, 2048>}, {transform_indices = @transform_2, window_bounds = array<i64: 1, 1, 2048>}, {transform_indices = @transform_3, window_bounds = array<i64: 1, 2048>}, {transform_indices = @transform_4, window_bounds = array<i64: 1, 2048>}, {transform_indices = @transform_5, window_bounds = array<i64: 1, 2048>}]} {
    %c0 = arith.constant 0 : index
    %0 = memref.load %arg1[%c0] : memref<1xf32, #tpu.memory_space<smem>>
    %c0_0 = arith.constant 0 : index
    %c0_1 = arith.constant 0 : index
    %c0_2 = arith.constant 0 : index
    %1 = vector.load %arg3[%c0_0, %c0_1, %c0_2] : memref<1x1x2048xf32, #tpu.memory_space<vmem>>, vector<1x1x2048xf32>
    %2 = vector.shape_cast %1 : vector<1x1x2048xf32> to vector<1x2048xf32>
    %c0_3 = arith.constant 0 : index
    %c0_4 = arith.constant 0 : index
    %c0_5 = arith.constant 0 : index
    %3 = vector.load %arg2[%c0_3, %c0_4, %c0_5] : memref<1x1x2048xf32, #tpu.memory_space<vmem>>, vector<1x1x2048xf32>
    %4 = vector.shape_cast %3 : vector<1x1x2048xf32> to vector<1x2048xf32>
    %5 = arith.subf %4, %2 : vector<1x2048xf32>
    %6 = vector.broadcast %0 : f32 to vector<1x2048xf32>
    %7 = arith.mulf %5, %6 : vector<1x2048xf32>
    %8 = arith.addf %2, %7 : vector<1x2048xf32>
    %c0_6 = arith.constant 0 : index
    %c0_7 = arith.constant 0 : index
    %9 = vector.load %arg5[%c0_6, %c0_7] : memref<1x2048xf32, #tpu.memory_space<vmem>>, vector<1x2048xf32>
    %c0_8 = arith.constant 0 : index
    %c0_9 = arith.constant 0 : index
    %10 = vector.load %arg4[%c0_8, %c0_9] : memref<1x2048xf32, #tpu.memory_space<vmem>>, vector<1x2048xf32>
    %11 = arith.mulf %10, %9 : vector<1x2048xf32>
    %cst = arith.constant 1.000000e+00 : f32
    %12 = vector.broadcast %cst : f32 to vector<1x2048xf32>
    %13 = arith.subf %12, %9 : vector<1x2048xf32>
    %14 = arith.mulf %13, %8 : vector<1x2048xf32>
    %15 = arith.addf %11, %14 : vector<1x2048xf32>
    %c0_10 = arith.constant 0 : index
    %c0_11 = arith.constant 0 : index
    %16 = vector.load %arg6[%c0_10, %c0_11] : memref<1x2048xf32, #tpu.memory_space<vmem>>, vector<1x2048xf32>
    tpu.vector_store %arg6[%c0_10, %c0_11], %15 {strides = array<i32>} : memref<1x2048xf32, #tpu.memory_space<vmem>>, vector<1x2048xf32>,
    return
  }
  func.func @transform_0(%arg0: i32) -> i32 {
    %c0_i32 = arith.constant 0 : i32
    %c0_i32_0 = arith.constant 0 : i32
    return %c0_i32 : i32
  }
  func.func @transform_1(%arg0: i32) -> (i32, i32, i32) {
    %c0_i32 = arith.constant 0 : i32
    %c0_i32_0 = arith.constant 0 : i32
    %c0_i32_1 = arith.constant 0 : i32
    return %c0_i32, %arg0, %c0_i32_0 : i32, i32, i32
  }
  func.func @transform_2(%arg0: i32) -> (i32, i32, i32) {
    %c1_i32 = arith.constant 1 : i32
    %c0_i32 = arith.constant 0 : i32
    %c0_i32_0 = arith.constant 0 : i32
    return %c1_i32, %arg0, %c0_i32 : i32, i32, i32
  }
  func.func @transform_3(%arg0: i32) -> (i32, i32) {
    %c0_i32 = arith.constant 0 : i32
    %c0_i32_0 = arith.constant 0 : i32
    return %arg0, %c0_i32 : i32, i32
  }
  func.func @transform_4(%arg0: i32) -> (i32, i32) {
    %c0_i32 = arith.constant 0 : i32
    %c0_i32_0 = arith.constant 0 : i32
    return %arg0, %c0_i32 : i32, i32
  }
  func.func @transform_5(%arg0: i32) -> (i32, i32) {
    %c0_i32 = arith.constant 0 : i32
    %c0_i32_0 = arith.constant 0 : i32
    return %arg0, %c0_i32 : i32, i32
  }
}

</mosaic_0001>

<llo_original>
// kernel: tpu_custom_call.1
$region0: #{tpu_custom_call.1}
  #allocation0 [shape = 'u32[]', space=smem, size = 0x4, offset = 0x4, fixed_abs, tag = 'smem constant byte address 0x4 - core index']
  #allocation1 [shape = 'u32[72,128]{1,0:T(1,128)}', space=vmem, size = 0x9000, scoped, tag = 'internal scratch']
  #allocation2 [shape = 'f32[1]{0:T(128)S(6)}', space=smem, size = 0x200, scoped, tag = 'scoped memory for tpu_custom_call.1']
  %s0 = inlined_call_operand.<no memory space> [shape: f32[1], index: 0, kind: input, shape index: {}]
  %s1 = inlined_call_operand.hbm [shape: f32[2,1,2048], index: 1, kind: input, shape index: {}]
  %s2 = inlined_call_operand.hbm [shape: f32[2,1,2048], index: 2, kind: input, shape index: {}]
  %s3 = inlined_call_operand.hbm [shape: f32[1,2048], index: 3, kind: input, shape index: {}]
  %s4 = inlined_call_operand.hbm [shape: f32[1,2048], index: 4, kind: input, shape index: {}]
  %s5 = inlined_call_operand.hbm [shape: f32[1,2048], index: 5, kind: output, shape index: {}]
  %s6 = sld [smem:[#allocation0]]
  $region46: #{tpu_custom_call.1} parent=0
    _
  %s8 = ssub.s32 1, %s6
  %s9 = scalar_select 0, %s8, %s6
  %10 = sst [smem:[#allocation2]] %s0
  $region1: #{tpu_custom_call.1} parent=0
    #allocation3 [shape = 'u8[8192]{0}', space=vmem, size = 0x2000, scoped, tag = 'input window, operand 1, single buffered']
    #allocation4 [shape = 's32[1]{0}', space=sflag, size = 0x4, scoped, tag = 'scoped memory for tpu_custom_call.1']
    #allocation5 [shape = 's32[1]{0}', space=sflag, size = 0x4, scoped, tag = 'scoped memory for tpu_custom_call.1']
    #allocation6 [shape = 'u8[8192]{0}', space=vmem, size = 0x2000, scoped, tag = 'input window, operand 2, single buffered']
    #allocation7 [shape = 's32[1]{0}', space=sflag, size = 0x4, scoped, tag = 'scoped memory for tpu_custom_call.1']
    #allocation8 [shape = 'u8[8192]{0}', space=vmem, size = 0x2000, scoped, tag = 'input window, operand 3, single buffered']
    #allocation9 [shape = 'u8[8192]{0}', space=vmem, size = 0x2000, scoped, tag = 'input window, operand 4, single buffered']
    #allocation10 [shape = 's32[1]{0}', space=sflag, size = 0x4, scoped, tag = 'scoped memory for tpu_custom_call.1']
    #allocation11 [shape = 'u8[8192]{0}', space=vmem, size = 0x2000, scoped, tag = 'output window, operand 0, single buffered']
    %11 = vsyncpa [#allocation4], 0
    %12 = vsyncpa [#allocation7], 0
    %13 = vsyncpa [#allocation10], 0
    %14 = vsyncpa [#allocation5], 0
    // Predicated region
    $region2: #{tpu_custom_call.1} parent=1 // pred_check
      _
    $region3: #{tpu_custom_call.1} parent=1 // pred_check_branch
      %16 = sbr.rel (0) target = $region5
    $region4: #{tpu_custom_call.1} parent=1 // pred_region
      _
    $region5: #{tpu_custom_call.1} parent=1 // pred_fallthru
      _
    // Predicated region
    $region6: #{tpu_custom_call.1} parent=1 // pred_check
      _
    $region7: #{tpu_custom_call.1} parent=1 // pred_check_branch
      %18 = sbr.rel (0) target = $region9
    $region8: #{tpu_custom_call.1} parent=1 // pred_region
      %20 = vsyncadd [#allocation4], 0
      %s22 = sshll.u32 %s1, 4
      %s23 = int_to_ptr.hbm [resolvable:$true] %s22
      %s24 = sshll.u32 [#allocation3], 4
      %s25 = int_to_ptr.vmem [resolvable:$true] %s24
      %27 = dma.hbm_to_vmem [thread:$0]  %s23, 256, %s25, [#allocation4]
    $region9: #{tpu_custom_call.1} parent=1 // pred_fallthru
      _
    // Predicated region
    $region10: #{tpu_custom_call.1} parent=1 // pred_check
      _
    $region11: #{tpu_custom_call.1} parent=1 // pred_check_branch
      %29 = sbr.rel (0) target = $region13
    $region12: #{tpu_custom_call.1} parent=1 // pred_region
      %31 = vsyncadd [#allocation7], 0
      %s32 = scalar_lea.hbm %s2, 16
      %s34 = sshll.u32 %s32, 4
      %s35 = int_to_ptr.hbm [resolvable:$true] %s34
      %s36 = sshll.u32 [#allocation6], 4
      %s37 = int_to_ptr.vmem [resolvable:$true] %s36
      %39 = dma.hbm_to_vmem [thread:$0]  %s35, 256, %s37, [#allocation7]
    $region13: #{tpu_custom_call.1} parent=1 // pred_fallthru
      _
    // Predicated region
    $region14: #{tpu_custom_call.1} parent=1 // pred_check
      _
    $region15: #{tpu_custom_call.1} parent=1 // pred_check_branch
      %41 = sbr.rel (0) target = $region17
    $region16: #{tpu_custom_call.1} parent=1 // pred_region
      %43 = vsyncadd [#allocation7], 0
      %s45 = sshll.u32 %s3, 4
      %s46 = int_to_ptr.hbm [resolvable:$true] %s45
      %s47 = sshll.u32 [#allocation8], 4
      %s48 = int_to_ptr.vmem [resolvable:$true] %s47
      %50 = dma.hbm_to_vmem [thread:$0]  %s46, 256, %s48, [#allocation7]
    $region17: #{tpu_custom_call.1} parent=1 // pred_fallthru
      _
    // Predicated region
    $region18: #{tpu_custom_call.1} parent=1 // pred_check
      _
    $region19: #{tpu_custom_call.1} parent=1 // pred_check_branch
      %52 = sbr.rel (0) target = $region21
    $region20: #{tpu_custom_call.1} parent=1 // pred_region
      %54 = vsyncadd [#allocation10], 0
      %s56 = sshll.u32 %s4, 4
      %s57 = int_to_ptr.hbm [resolvable:$true] %s56
      %s58 = sshll.u32 [#allocation9], 4
      %s59 = int_to_ptr.vmem [resolvable:$true] %s58
      %61 = dma.hbm_to_vmem [thread:$0]  %s57, 256, %s59, [#allocation10]
    $region21: #{tpu_custom_call.1} parent=1 // pred_fallthru
      _
    // Predicated region
    $region22: #{tpu_custom_call.1} parent=1 // pred_check
      _
    $region23: #{tpu_custom_call.1} parent=1 // pred_check_branch
      %63 = sbr.rel (0) target = $region25
    $region24: #{tpu_custom_call.1} parent=1 // pred_region
      %65 = dma.done [#allocation4], 256
    $region25: #{tpu_custom_call.1} parent=1 // pred_fallthru
      _
    // Predicated region
    $region26: #{tpu_custom_call.1} parent=1 // pred_check
      _
    $region27: #{tpu_custom_call.1} parent=1 // pred_check_branch
      %67 = sbr.rel (0) target = $region29
    $region28: #{tpu_custom_call.1} parent=1 // pred_region
      %69 = dma.done [#allocation7], 256
    $region29: #{tpu_custom_call.1} parent=1 // pred_fallthru
      _
    // Predicated region
    $region30: #{tpu_custom_call.1} parent=1 // pred_check
      _
    $region31: #{tpu_custom_call.1} parent=1 // pred_check_branch
      %71 = sbr.rel (0) target = $region33
    $region32: #{tpu_custom_call.1} parent=1 // pred_region
      %73 = dma.done [#allocation7], 256
    $region33: #{tpu_custom_call.1} parent=1 // pred_fallthru
      _
    // Predicated region
    $region34: #{tpu_custom_call.1} parent=1 // pred_check
      _
    $region35: #{tpu_custom_call.1} parent=1 // pred_check_branch
      %75 = sbr.rel (0) target = $region37
    $region36: #{tpu_custom_call.1} parent=1 // pred_region
      %77 = dma.done [#allocation10], 256
    $region37: #{tpu_custom_call.1} parent=1 // pred_fallthru
      _
    %s78 = sld [smem:[#allocation2]]
    %v79 = vld [vmem:[#allocation6] sm:$0xff]
    %v80 = vld [vmem:[#allocation6 + $0x8] sm:$0xff]
    %v81 = vld [vmem:[#allocation3] sm:$0xff]
    %v82 = vld [vmem:[#allocation3 + $0x8] sm:$0xff]
    %v83 = vsub.f32 %v81, %v79
    %v84 = vsub.f32 %v82, %v80
    %v85 = vstv %s78
    %v86 = vmul.f32 %v83, %v85
    %v87 = vmul.f32 %v84, %v85
    %v88 = vadd.f32 %v79, %v86
    %v89 = vadd.f32 %v80, %v87
    %v90 = vld [vmem:[#allocation9] sm:$0xff]
    %v91 = vld [vmem:[#allocation9 + $0x8] sm:$0xff]
    %v92 = vld [vmem:[#allocation8] sm:$0xff]
    %v93 = vld [vmem:[#allocation8 + $0x8] sm:$0xff]
    %v94 = vmul.f32 %v92, %v90
    %v95 = vmul.f32 %v93, %v91
    %v96 = vsub.f32 1.0, %v90
    %v97 = vsub.f32 1.0, %v91
    %v98 = vmul.f32 %v96, %v88
    %v99 = vmul.f32 %v97, %v89
    %v100 = vadd.f32 %v94, %v98
    %v101 = vadd.f32 %v95, %v99
    %102 = vst [vmem:[#allocation11] sm:$0xff] %v100
    %103 = vst [vmem:[#allocation11 + $0x8] sm:$0xff] %v101
    // Predicated region
    $region38: #{tpu_custom_call.1} parent=1 // pred_check
      _
    $region39: #{tpu_custom_call.1} parent=1 // pred_check_branch
      %105 = sbr.rel (0) target = $region41
    $region40: #{tpu_custom_call.1} parent=1 // pred_region
      %107 = vsyncadd [#allocation5], 0
      %s109 = sshll.u32 [#allocation11], 4
      %s110 = int_to_ptr.vmem [resolvable:$true] %s109
      %s111 = sshll.u32 %s5, 4
      %s112 = int_to_ptr.hbm [resolvable:$true] %s111
      %114 = dma.vmem_to_hbm [thread:$0]  %s110, 256, %s112, [#allocation5]
    $region41: #{tpu_custom_call.1} parent=1 // pred_fallthru
      _
    // Predicated region
    $region42: #{tpu_custom_call.1} parent=1 // pred_check
      _
    $region43: #{tpu_custom_call.1} parent=1 // pred_check_branch
      %116 = sbr.rel (0) target = $region45
    $region44: #{tpu_custom_call.1} parent=1 // pred_region
      %118 = dma.done [#allocation5], 256
    $region45: #{tpu_custom_call.1} parent=1 // pred_fallthru
      _
    %119 = vsyncpa [#allocation4], 1
    %120 = vsyncpa [#allocation7], 1
    %121 = vsyncpa [#allocation10], 1
    %122 = vsyncpa [#allocation5], 1

</llo_original>
